<compile_context>
chip_gen: v7x
topology: tpu7x:2x2x1
jax: 0.10.0
libtpu: 0.0.40
codegen_flags: <defaults>
</compile_context>

<pallas_src>
import functools

import jax
import jax.numpy as jnp
from jax.experimental import pallas as pl
from jax.experimental.pallas import tpu as pltpu


# ---------------------------------------------------------------------------
# Pallas kernel
# ---------------------------------------------------------------------------
def specaug_apply_kernel(fill_ref, x_ref, keep_ref, o_ref):
    """y = where(keep, x, fill).

    x_ref    : (r_block, l_chunk)  features, sublane/lane dense
    keep_ref : (r_block, l_chunk)  int8 keep mask (1 = keep, 0 = masked)
    fill_ref : (1,) f32 in SMEM    fill value (0 for mask_zero, mean(x) else)
    """
    x = x_ref[...]
    keep = keep_ref[...] != 0
    fill = fill_ref[0].astype(x.dtype)
    o_ref[...] = jnp.where(keep, x, fill)


# ---------------------------------------------------------------------------
# Block planning + Pallas wrapper
# ---------------------------------------------------------------------------
def _block_plan(R, L, itemsize, target_bytes=2 * 1024 * 1024, lane_cap=8192):
    """Pick a (r_block, l_chunk) block for a (R, L) array.

    l_chunk is a multiple of 128 (lane-dense stores); r_block is a multiple of
    8 sublanes (32 when the batch allows, so the int8 keep block is
    tile-aligned) and never exceeds the array extent.  x blocks target
    ~target_bytes; the grid uses cdiv so non-dividing extents get a masked
    tail block.  For small inputs a block dim is shrunk so the two parallel
    grid axes give >= 2 total steps (keeps both v7x TensorCores busy).
    """
    # Lane (last-dim) chunk: multiple of 128, or the full dim if it is small.
    if L <= 128:
        l_chunk = L                                    # full dim: always legal
    elif L % 128 == 0:
        l_chunk = min(L, lane_cap)
    else:
        l_chunk = min((L // 128) * 128, lane_cap)      # cdiv grid masks the tail

    # Row (sublane) block.
    row_tile = 32 if R >= 32 else 8
    if R <= row_tile:
        r_block = R                                    # full dim: always legal
    else:
        r_block = max(row_tile,
                      (target_bytes // (l_chunk * itemsize)) // row_tile * row_tile)
        r_block = min(r_block, (R // row_tile) * row_tile)

    # Megacore guard: avoid a single-step grid when there is room to split.
    def steps(n, b):
        return -(-n // b)

    while steps(R, r_block) * steps(L, l_chunk) < 2:
        if r_block >= 16 and r_block % 8 == 0:
            r_block = max(8, (r_block // 2) // 8 * 8)
        elif l_chunk >= 256 and l_chunk % 128 == 0:
            l_chunk = max(128, (l_chunk // 2) // 128 * 128)
        else:
            break
    return r_block, l_chunk


def apply_specaug(x2, keep2, fill):
    """x2: (R, L) features, keep2: (R, L) int8 keep mask, fill: (1,) f32."""
    R, L = x2.shape
    r_block, l_chunk = _block_plan(R, L, x2.dtype.itemsize)
    grid = (pl.cdiv(R, r_block), pl.cdiv(L, l_chunk))
    return pl.pallas_call(
        specaug_apply_kernel,
        out_shape=jax.ShapeDtypeStruct((R, L), x2.dtype),
        grid=grid,
        in_specs=[
            pl.BlockSpec(memory_space=pltpu.SMEM),                    # fill scalar
            pl.BlockSpec((r_block, l_chunk), lambda i, j: (i, j)),    # x
            pl.BlockSpec((r_block, l_chunk), lambda i, j: (i, j)),    # keep mask
        ],
        out_specs=pl.BlockSpec((r_block, l_chunk), lambda i, j: (i, j)),
        compiler_params=pltpu.CompilerParams(
            dimension_semantics=("parallel", "parallel"),
            vmem_limit_bytes=32 * 1024 * 1024),
    )(fill, x2, keep2)


# ---------------------------------------------------------------------------
# Random keep-vector construction (glue, plain JAX)
# ---------------------------------------------------------------------------
def specaug_keep_vectors(key, N, T, F, *, p=1.0, max_bands=30, max_frame=40,
                         num_freq_masks=1, num_time_masks=1):
    """Return boolean keep vectors t_keep: (N, T), f_keep: (N, F)."""
    max_frame = max(1, min(max_frame, int(T * p)))
    max_bands = max(1, min(max_bands, F))

    kfw, kfs, ktw, kts = jax.random.split(key, 4)

    # frequency masks: width ~ U[0, max_bands), start clipped to [0, F - width]
    f_w = jax.random.randint(kfw, (N, num_freq_masks), 0, max_bands)
    f_s = jnp.minimum(jax.random.randint(kfs, (N, num_freq_masks), 0, F), F - f_w)
    fidx = jnp.arange(F)
    f_keep = jnp.all(
        (fidx[None, None, :] < f_s[..., None]) |
        (fidx[None, None, :] >= (f_s + f_w)[..., None]), axis=1)        # (N, F)

    # time masks: width ~ U[0, max_frame), start clipped to [0, T - width]
    t_w = jax.random.randint(ktw, (N, num_time_masks), 0, max_frame)
    t_s = jnp.minimum(jax.random.randint(kts, (N, num_time_masks), 0, T), T - t_w)
    tidx = jnp.arange(T)
    t_keep = jnp.all(
        (tidx[None, None, :] < t_s[..., None]) |
        (tidx[None, None, :] >= (t_s + t_w)[..., None]), axis=1)        # (N, T)

    return t_keep, f_keep


# ---------------------------------------------------------------------------
# SpecAugTransform forward
# ---------------------------------------------------------------------------
def spec_aug_transform(x, key, *, training=True, p=0.5, p_time=1.0,
                       time_args=(40, 1), freq_args=(30, 1), mask_zero=True):
    """JAX/Pallas equivalent of SpecAugTransform.forward.

    x: (N, C, T, F) or (N, T, F) features; key: jax PRNGKey.
    """
    if not training:
        return x

    kdo, kmask = jax.random.split(key)
    do_aug = jax.random.uniform(kdo, ()) < p          # traced bool, jit-safe

    if x.ndim == 4:
        N, C, T, F = x.shape
    else:
        N, T, F = x.shape
        C = 1
    L = T * F
    R = N * C

    def _augment(xv):
        t_keep, f_keep = specaug_keep_vectors(
            kmask, N, T, F, p=p_time,
            max_bands=freq_args[0], max_frame=time_args[0],
            num_freq_masks=freq_args[1], num_time_masks=time_args[1])
        keep = (t_keep[:, :, None] & f_keep[:, None, :]).reshape(N, L)
        if C > 1:
            # TODO(synk): rebuild keep in-kernel from t_keep/f_keep (iota +
            # divmod by F) to avoid materializing the C-broadcast mask in HBM.
            keep = jnp.broadcast_to(keep[:, None, :], (N, C, L))
        keep2 = keep.reshape(R, L).astype(jnp.int8)
        if mask_zero:
            fill = jnp.zeros((1,), jnp.float32)
        else:
            # PyTorch reference fills with the *global* x.mean().
            fill = jnp.reshape(jnp.mean(xv, dtype=jnp.float32), (1,))
        y2 = apply_specaug(xv.reshape(R, L), keep2, fill)
        return y2.reshape(xv.shape)

    return jax.lax.cond(do_aug, _augment, lambda v: v, x)


# ---------------------------------------------------------------------------
# main
# ---------------------------------------------------------------------------
if __name__ == "__main__":
    key = jax.random.PRNGKey(0)
    kx, ktransform = jax.random.split(key)

    # small shapes consistent with N x C x T x F features
    N, C, T, F = 2, 4, 16, 16
    x = jax.random.normal(kx, (N, C, T, F), dtype=jnp.float32)

    aug_kwargs = dict(training=True, p=1.0, p_time=1.0,
                      time_args=(8, 1), freq_args=(6, 1))
    aug_mul = jax.jit(functools.partial(spec_aug_transform, mask_zero=True, **aug_kwargs))
    aug_fill = jax.jit(functools.partial(spec_aug_transform, mask_zero=False, **aug_kwargs))

    # pure-JAX reference mask (re-derive the same key split as the transform)
    _, kmask_ref = jax.random.split(ktransform)
    t_keep_r, f_keep_r = specaug_keep_vectors(
        kmask_ref, N, T, F, p=1.0, max_bands=6, max_frame=8,
        num_freq_masks=1, num_time_masks=1)
    mask_ref = (t_keep_r[:, :, None] & f_keep_r[:, None, :]).astype(x.dtype)[:, None]

    # ---- mask_zero=True path (p=1.0 so augmentation always fires) ----
    y = jax.block_until_ready(aug_mul(x, ktransform))
    ref = x * mask_ref
    assert jnp.allclose(y, ref, atol=1e-6), "mask_zero=True path mismatch"

    # ---- mask_zero=False path (masked_fill with global mean) ----
    y_fill = jax.block_until_ready(aug_fill(x, ktransform))
    ref_fill = jnp.where(mask_ref == 0, jnp.mean(x), x)
    assert jnp.allclose(y_fill, ref_fill, atol=1e-5), "mask_zero=False path mismatch"

    # ---- 3-D (N, T, F) input, i.e. C == 1 (common ASR case) ----
    y3d = jax.block_until_ready(aug_mul(x[:, 0], ktransform))
    ref3d = x[:, 0] * mask_ref[:, 0]
    assert jnp.allclose(y3d, ref3d, atol=1e-6), "3-D input path mismatch"

    # ---- eval / no-augmentation path is identity ----
    y_eval = spec_aug_transform(x, ktransform, training=False)
    assert jnp.array_equal(y_eval, x)

    print("KERNEL_OK")
</pallas_src>

<mosaic_0001>
module attributes {stable_mosaic.version = 11 : i64} {
  func.func @specaug_apply_kernel(%arg0: i32, %arg1: i32, %arg2: memref<1xf32, #tpu.memory_space<smem>>, %arg3: memref<8x128xf32, #tpu.memory_space<vmem>>, %arg4: memref<8x128xi8, #tpu.memory_space<vmem>>, %arg5: memref<8x128xf32, #tpu.memory_space<vmem>>) attributes {dimension_semantics = [#tpu.dimension_semantics<parallel>, #tpu.dimension_semantics<parallel>], iteration_bounds = array<i64: 1, 2>, scalar_prefetch = 0 : i64, scratch_operands = 0 : i64, tpu.core_type = #tpu.core_type<tc>, window_params = [{transform_indices = @transform_0, window_bounds = array<i64: 1>}, {transform_indices = @transform_1, window_bounds = array<i64: 8, 128>}, {transform_indices = @transform_2, window_bounds = array<i64: 8, 128>}, {transform_indices = @transform_3, window_bounds = array<i64: 8, 128>}]} {
    %c0 = arith.constant 0 : index
    %c0_0 = arith.constant 0 : index
    %0 = vector.load %arg3[%c0, %c0_0] : memref<8x128xf32, #tpu.memory_space<vmem>>, vector<8x128xf32>
    %c0_1 = arith.constant 0 : index
    %c0_2 = arith.constant 0 : index
    %1 = vector.load %arg4[%c0_1, %c0_2] : memref<8x128xi8, #tpu.memory_space<vmem>>, vector<8x128xi8>
    %c0_i8 = arith.constant 0 : i8
    %2 = vector.broadcast %c0_i8 : i8 to vector<8x128xi8>
    %3 = arith.cmpi ne, %1, %2 : vector<8x128xi8>
    %c0_3 = arith.constant 0 : index
    %4 = memref.load %arg2[%c0_3] : memref<1xf32, #tpu.memory_space<smem>>
    %5 = vector.broadcast %4 : f32 to vector<8x128xf32>
    %6 = arith.select %3, %0, %5 : vector<8x128xi1>, vector<8x128xf32>
    %c0_4 = arith.constant 0 : index
    %c0_5 = arith.constant 0 : index
    %7 = vector.load %arg5[%c0_4, %c0_5] : memref<8x128xf32, #tpu.memory_space<vmem>>, vector<8x128xf32>
    tpu.vector_store %arg5[%c0_4, %c0_5], %6 {strides = array<i32>} : memref<8x128xf32, #tpu.memory_space<vmem>>, vector<8x128xf32>,
    return
  }
  func.func @transform_0(%arg0: i32, %arg1: i32) -> i32 {
    %c0_i32 = arith.constant 0 : i32
    %c0_i32_0 = arith.constant 0 : i32
    return %c0_i32 : i32
  }
  func.func @transform_1(%arg0: i32, %arg1: i32) -> (i32, i32) {
    %c0_i32 = arith.constant 0 : i32
    return %arg0, %arg1 : i32, i32
  }
  func.func @transform_2(%arg0: i32, %arg1: i32) -> (i32, i32) {
    %c0_i32 = arith.constant 0 : i32
    return %arg0, %arg1 : i32, i32
  }
  func.func @transform_3(%arg0: i32, %arg1: i32) -> (i32, i32) {
    %c0_i32 = arith.constant 0 : i32
    return %arg0, %arg1 : i32, i32
  }
}

</mosaic_0001>

<llo_original>
// kernel: branch_1_fun.1
$region0: #{branch_1_fun.1}
  #allocation0 [shape = 'u32[]', space=smem, size = 0x4, offset = 0x4, fixed_abs, tag = 'smem constant byte address 0x4 - core index']
  #allocation1 [shape = 'u32[144,128]{1,0:T(1,128)}', space=vmem, size = 0x12000, scoped, tag = 'internal scratch']
  #allocation2 [shape = 'f32[1]{0:T(128)S(6)}', space=smem, size = 0x200, scoped, tag = 'scoped memory for branch_1_fun.1']
  %s0 = inlined_call_operand.<no memory space> [shape: f32[1], index: 0, kind: input, shape index: {}]
  %s1 = inlined_call_operand.vmem [shape: f32[8,256], index: 1, kind: input, shape index: {}]
  %s2 = inlined_call_operand.vmem [shape: s8[8,256], index: 2, kind: input, shape index: {}]
  %s3 = inlined_call_operand.vmem [shape: f32[8,256], index: 3, kind: output, shape index: {}]
  %s4 = sld [smem:[#allocation0]]
  $region45: #{branch_1_fun.1} parent=0
    _
  %s6 = ssub.s32 1, %s4
  %s7 = scalar_select 0, %s6, %s4
  %8 = sst [smem:[#allocation2]] %s0
  loop: start=0, step=1, limit=4
  $region2: #{branch_1_fun.1} parent=0 // loop_pre_header
    _
  $region3: #{branch_1_fun.1} parent=0 // loop_header
    %s10 = sphi 0, %s14
    %p11 = scmp.ge.s32.totalorder %s10, 4
    %s17 = sphi 0, %s29
    %s18 = sphi 0, %s25
    %s19 = sphi 0, %s17
    %s20 = sphi 0, %s18
    %s21 = sphi 0, %s19
    %s22 = sphi 0, %s20
    %s30 = sphi 0, %s30
    %s32 = sphi 0, %s30
    %s33 = sphi 0, %s32
    %s47 = sphi 0, %s33
    %s55 = sphi 0, %s57
    %s58 = sphi 0, %s55
    %s59 = sphi 0, %s58
    %s75 = sphi 0, %s59
    %s83 = sphi 0, %s85
    %s86 = sphi 0, %s83
    %s87 = sphi 0, %s86
    %s103 = sphi 0, %s87
    %s111 = sphi 0, %s113
    %s114 = sphi 0, %s111
    %s115 = sphi 0, %s114
    %s131 = sphi 0, %s115
  $region4: #{branch_1_fun.1} parent=0 // loop_header_branch
    %13 = sbr.rel (%p11) target = $region8
  $region5: #{branch_1_fun.1} parent=0 // loop_body
    %s15 = ssub.s32 %s10, 1
    %s16 = ssub.s32 %s10, 2
    %s23 = sadd.s32 1, %s18
    %p24 = scmp.ge.s32.totalorder %s23, 2
    %s25 = scalar_select %p24, 0, %s23
    %s26 = sadd.s32 1, %s17
    %s27 = scalar_select %p24, %s26, %s17
    %p28 = scmp.ge.s32.totalorder %s27, 1
    %s29 = scalar_select %p28, 0, %s27
    %s31 = sadd.s32 %s30, 1
    %p34 = scmp.eq.s32.totalorder %s10, 1
    %p35 = scmp.ne.s32.totalorder %s30, %s32
    %p36 = scmp.eq.s32.totalorder %s10, 0
    %p37 = por %p35, %p36
    %p38 = scmp.ne.s32.totalorder %s30, %s32
    %p39 = scmp.eq.s32.totalorder %s15, 1
    %p40 = por %p38, %p39
    %p41 = scmp.ne.s32.totalorder %s32, %s33
    %p42 = scmp.eq.s32.totalorder %s15, 0
    %p43 = por %p41, %p42
    %p44 = scmp.ne.s32.totalorder %s32, %s33
    %p45 = scmp.eq.s32.totalorder %s16, 1
    %p46 = por %p44, %p45
    %p48 = scmp.ne.s32.totalorder %s33, %s47
    %p49 = scmp.eq.s32.totalorder %s16, 0
    %p50 = por %p48, %p49
    %s51 = ssub.s32 %s17, %s29
    %s52 = ssub.s32 %s18, %s25
    %s53 = sor.u32 %s51, %s52
    %p54 = scmp.eq.s32.totalorder %s53, 0
    %s56 = sadd.s32 %s55, 1
    %s57 = scalar_select %p54, %s55, %s56
    %p60 = pneg %p54
    %p61 = scmp.eq.s32.totalorder %s10, 1
    %p62 = por %p60, %p61
    %p63 = scmp.ne.s32.totalorder %s55, %s58
    %p64 = scmp.eq.s32.totalorder %s10, 0
    %p65 = por %p63, %p64
    %p66 = scmp.ne.s32.totalorder %s55, %s58
    %p67 = scmp.eq.s32.totalorder %s15, 1
    %p68 = por %p66, %p67
    %p69 = scmp.ne.s32.totalorder %s58, %s59
    %p70 = scmp.eq.s32.totalorder %s15, 0
    %p71 = por %p69, %p70
    %p72 = scmp.ne.s32.totalorder %s58, %s59
    %p73 = scmp.eq.s32.totalorder %s16, 1
    %p74 = por %p72, %p73
    %p76 = scmp.ne.s32.totalorder %s59, %s75
    %p77 = scmp.eq.s32.totalorder %s16, 0
    %p78 = por %p76, %p77
    %s79 = ssub.s32 %s17, %s29
    %s80 = ssub.s32 %s18, %s25
    %s81 = sor.u32 %s79, %s80
    %p82 = scmp.eq.s32.totalorder %s81, 0
    %s84 = sadd.s32 %s83, 1
    %s85 = scalar_select %p82, %s83, %s84
    %p88 = pneg %p82
    %p89 = scmp.eq.s32.totalorder %s10, 1
    %p90 = por %p88, %p89
    %p91 = scmp.ne.s32.totalorder %s83, %s86
    %p92 = scmp.eq.s32.totalorder %s10, 0
    %p93 = por %p91, %p92
    %p94 = scmp.ne.s32.totalorder %s83, %s86
    %p95 = scmp.eq.s32.totalorder %s15, 1
    %p96 = por %p94, %p95
    %p97 = scmp.ne.s32.totalorder %s86, %s87
    %p98 = scmp.eq.s32.totalorder %s15, 0
    %p99 = por %p97, %p98
    %p100 = scmp.ne.s32.totalorder %s86, %s87
    %p101 = scmp.eq.s32.totalorder %s16, 1
    %p102 = por %p100, %p101
    %p104 = scmp.ne.s32.totalorder %s87, %s103
    %p105 = scmp.eq.s32.totalorder %s16, 0
    %p106 = por %p104, %p105
    %s107 = ssub.s32 %s17, %s29
    %s108 = ssub.s32 %s18, %s25
    %s109 = sor.u32 %s107, %s108
    %p110 = scmp.eq.s32.totalorder %s109, 0
    %s112 = sadd.s32 %s111, 1
    %s113 = scalar_select %p110, %s111, %s112
    %p116 = pneg %p110
    %p117 = scmp.eq.s32.totalorder %s10, 1
    %p118 = por %p116, %p117
    %p119 = scmp.ne.s32.totalorder %s111, %s114
    %p120 = scmp.eq.s32.totalorder %s10, 0
    %p121 = por %p119, %p120
    %p122 = scmp.ne.s32.totalorder %s111, %s114
    %p123 = scmp.eq.s32.totalorder %s15, 1
    %p124 = por %p122, %p123
    %p125 = scmp.ne.s32.totalorder %s114, %s115
    %p126 = scmp.eq.s32.totalorder %s15, 0
    %p127 = por %p125, %p126
    %p128 = scmp.ne.s32.totalorder %s114, %s115
    %p129 = scmp.eq.s32.totalorder %s16, 1
    %p130 = por %p128, %p129
    %p132 = scmp.ne.s32.totalorder %s115, %s131
    %p133 = scmp.eq.s32.totalorder %s16, 0
    %p134 = por %p132, %p133
    %p135 = scmp.le.s32.totalorder 1, %s10
    %p136 = scmp.lt.s32.totalorder %s10, 3
    %p137 = pnand %p135, %p136
    %p138 = pneg %p137
    // Predicated region
    $region9: #{branch_1_fun.1} parent=5 // pred_check
      _
    $region10: #{branch_1_fun.1} parent=5 // pred_check_branch
      %140 = sbr.rel (%p137) target = $region12
    $region11: #{branch_1_fun.1} parent=5 // pred_region
      %s141 = ssub.s32 %s10, 1
      // Predicated region
      $region13: #{branch_1_fun.1} parent=11 // pred_check
        %p142 = pneg %p43
      $region14: #{branch_1_fun.1} parent=11 // pred_check_branch
        %144 = sbr.rel (%p142) target = $region16
      $region15: #{branch_1_fun.1} parent=11 // pred_region
        _
      $region16: #{branch_1_fun.1} parent=11 // pred_fallthru
        _
    $region12: #{branch_1_fun.1} parent=5 // pred_fallthru
      _
    %p145 = scmp.lt.s32.totalorder %s10, 2
    // Predicated region
    $region17: #{branch_1_fun.1} parent=5 // pred_check
      %p146 = pneg %p145
    $region18: #{branch_1_fun.1} parent=5 // pred_check_branch
      %148 = sbr.rel (%p146) target = $region20
    $region19: #{branch_1_fun.1} parent=5 // pred_region
      // Predicated region
      $region21: #{branch_1_fun.1} parent=19 // pred_check
        %p149 = pneg %p65
      $region22: #{branch_1_fun.1} parent=19 // pred_check_branch
        %151 = sbr.rel (%p149) target = $region24
      $region23: #{branch_1_fun.1} parent=19 // pred_region
        %p152 = scmp.lt.s32.totalorder %s17, 0
        %s153 = scalar_select %p152, %s17, 0
        %p154 = scmp.lt.s32.totalorder %s18, 1
        %s155 = scalar_select %p154, %s18, 1
        %s156 = smul.addr %s153, 2
        %s157 = sadd.s32 %s155, %s156
        %s158 = smul.addr %s157, 8
        %s159 = scalar_lea.vmem %s1, %s158
      $region24: #{branch_1_fun.1} parent=19 // pred_fallthru
        _
      // Predicated region
      $region25: #{branch_1_fun.1} parent=19 // pred_check
        %p160 = pneg %p93
      $region26: #{branch_1_fun.1} parent=19 // pred_check_branch
        %162 = sbr.rel (%p160) target = $region28
      $region27: #{branch_1_fun.1} parent=19 // pred_region
        %p163 = scmp.lt.s32.totalorder %s17, 0
        %s164 = scalar_select %p163, %s17, 0
        %p165 = scmp.lt.s32.totalorder %s18, 1
        %s166 = scalar_select %p165, %s18, 1
        %s167 = smul.addr %s164, 2
        %s168 = sadd.s32 %s166, %s167
        %s169 = smul.addr %s168, 2
        %s170 = scalar_lea.vmem %s2, %s169
      $region28: #{branch_1_fun.1} parent=19 // pred_fallthru
        _
    $region20: #{branch_1_fun.1} parent=5 // pred_fallthru
      _
    %p171 = scmp.le.s32.totalorder 1, %s10
    %p172 = scmp.lt.s32.totalorder %s10, 3
    %p173 = pnand %p171, %p172
    %p174 = pneg %p173
    // Predicated region
    $region29: #{branch_1_fun.1} parent=5 // pred_check
      _
    $region30: #{branch_1_fun.1} parent=5 // pred_check_branch
      %176 = sbr.rel (%p173) target = $region32
    $region31: #{branch_1_fun.1} parent=5 // pred_region
      %s177 = ssub.s32 %s10, 1
      %p178 = pneg %p43
      %p179 = pneg %p40
      %p180 = scmp.lt.s32.totalorder %s19, 0
      %s181 = scalar_select %p180, %s19, 0
      %p182 = scmp.lt.s32.totalorder %s20, 1
      %s183 = scalar_select %p182, %s20, 1
      %s184 = smul.addr %s181, 2
      %s185 = sadd.s32 %s183, %s184
      %s186 = smul.addr %s185, 8
      %s187 = scalar_lea.vmem %s1, %s186
      %p188 = pneg %p71
      %p189 = pneg %p68
      %p190 = scmp.lt.s32.totalorder %s19, 0
      %s191 = scalar_select %p190, %s19, 0
      %p192 = scmp.lt.s32.totalorder %s20, 1
      %s193 = scalar_select %p192, %s20, 1
      %s194 = smul.addr %s191, 2
      %s195 = sadd.s32 %s193, %s194
      %s196 = smul.addr %s195, 2
      %s197 = scalar_lea.vmem %s2, %s196
      %p198 = pneg %p99
      %p199 = pneg %p96
      %p200 = pneg %p127
      %p201 = pneg %p124
      %p202 = scmp.lt.s32.totalorder %s19, 0
      %s203 = scalar_select %p202, %s19, 0
      %p204 = scmp.lt.s32.totalorder %s20, 1
      %s205 = scalar_select %p204, %s20, 1
      %s206 = smul.addr %s203, 2
      %s207 = sadd.s32 %s205, %s206
      %s208 = smul.addr %s207, 8
      %s209 = scalar_lea.vmem %s3, %s208
      %p210 = scmp.lt.s32.totalorder %s19, 0
      %s211 = scalar_select %p210, %s19, 0
      %p212 = scmp.lt.s32.totalorder %s20, 1
      %s213 = scalar_select %p212, %s20, 1
      %s214 = smul.addr %s211, 2
      %s215 = sadd.s32 %s213, %s214
      %s216 = smul.addr %s215, 8
      %s217 = scalar_lea.vmem %s1, %s216
      %p218 = scmp.lt.s32.totalorder %s19, 0
      %s219 = scalar_select %p218, %s19, 0
      %p220 = scmp.lt.s32.totalorder %s20, 1
      %s221 = scalar_select %p220, %s20, 1
      %s222 = smul.addr %s219, 2
      %s223 = sadd.s32 %s221, %s222
      %s224 = smul.addr %s223, 2
      %s225 = scalar_lea.vmem %s2, %s224
      %p226 = scmp.lt.s32.totalorder %s19, 0
      %s227 = scalar_select %p226, %s19, 0
      %p228 = scmp.lt.s32.totalorder %s20, 1
      %s229 = scalar_select %p228, %s20, 1
      %s230 = smul.addr %s227, 2
      %s231 = sadd.s32 %s229, %s230
      %s232 = smul.addr %s231, 8
      %s233 = scalar_lea.vmem %s3, %s232
      %v236 = vld [vmem:[%s217] sm:$0xff]
      %v237 = vld [vmem:[%s225] sm:$0x3]
      %vm238 = vnez %v237
      %s239 = sld [smem:[#allocation2]]
      %v240 = vstv %s239
      %v241 = vsel %vm238, 16843009, 0
      %v242 = vunpack.c.0.s8 %v241
      %vm243 = vcmp.ne.s32.totalorder %v242, 0
      %v244 = vsel %vm243, %v236, %v240
      %245 = vst [vmem:[%s233] sm:$0xff] %v244
      %p246 = scmp.lt.s32.totalorder %s19, 0
      %s247 = scalar_select %p246, %s19, 0
      %p248 = scmp.lt.s32.totalorder %s20, 1
      %s249 = scalar_select %p248, %s20, 1
      %s250 = smul.addr %s247, 2
      %s251 = sadd.s32 %s249, %s250
      %s252 = smul.addr %s251, 8
      %s253 = scalar_lea.vmem %s3, %s252
      // Predicated region
      $region33: #{branch_1_fun.1} parent=31 // pred_check
        %p254 = pneg %p124
      $region34: #{branch_1_fun.1} parent=31 // pred_check_branch
        %256 = sbr.rel (%p254) target = $region36
      $region35: #{branch_1_fun.1} parent=31 // pred_region
        _
      $region36: #{branch_1_fun.1} parent=31 // pred_fallthru
        _
    $region32: #{branch_1_fun.1} parent=5 // pred_fallthru
      _
    %p257 = scmp.le.s32.totalorder 2, %s10
    // Predicated region
    $region37: #{branch_1_fun.1} parent=5 // pred_check
      %p258 = pneg %p257
    $region38: #{branch_1_fun.1} parent=5 // pred_check_branch
      %260 = sbr.rel (%p258) target = $region40
    $region39: #{branch_1_fun.1} parent=5 // pred_region
      %s261 = ssub.s32 %s10, 2
      // Predicated region
      $region41: #{branch_1_fun.1} parent=39 // pred_check
        %p262 = pneg %p130
      $region42: #{branch_1_fun.1} parent=39 // pred_check_branch
        %264 = sbr.rel (%p262) target = $region44
      $region43: #{branch_1_fun.1} parent=39 // pred_region
        %p265 = scmp.lt.s32.totalorder %s21, 0
        %s266 = scalar_select %p265, %s21, 0
        %p267 = scmp.lt.s32.totalorder %s22, 1
        %s268 = scalar_select %p267, %s22, 1
        %s269 = smul.addr %s266, 2
        %s270 = sadd.s32 %s268, %s269
        %s271 = smul.addr %s270, 8
        %s272 = scalar_lea.vmem %s3, %s271
      $region44: #{branch_1_fun.1} parent=39 // pred_fallthru
        _
    $region40: #{branch_1_fun.1} parent=5 // pred_fallthru
      _
  $region6: #{branch_1_fun.1} parent=0 // loop_footer
    %s14 = sadd.s32 1, %s10
  $region7: #{branch_1_fun.1} parent=0 // loop_footer_branch
    %9 = sbr.rel target = $region3
  $region8: #{branch_1_fun.1} parent=0 // loop_exit
    _

</llo_original>
